<compile_context>
chip_gen: v6e
topology: v6e:2x2x1
jax: 0.10.0
libtpu: 0.0.40
codegen_flags: <defaults>
</compile_context>

<pallas_src>
import functools

import jax
import jax.numpy as jnp
from jax.experimental import pallas as pl
from jax.experimental.pallas import tpu as pltpu

LANE = 128       # lane width / padded hidden dim of every layer
N_LAYERS = 4     # linear1..linear4


def _round_up(a, m):
    return (a + m - 1) // m * m


def mlp_kernel(x_ref, w_ref, b_ref, o_ref, *, in_pad):
    """x_ref: (TB, in_pad) f32, w_ref: (L,128,128) bf16, b_ref: (L,128) f32,
    o_ref: (TB,128) f32."""
    # ---- layer 0: only the first `in_pad` rows of W0 carry data (rest = 0 pad)
    h = jnp.dot(x_ref[...].astype(jnp.bfloat16), w_ref[0, :in_pad, :],
                preferred_element_type=jnp.float32)
    h = jnp.maximum(h + b_ref[0:1, :], 0.0)

    # ---- hidden layers 1..L-2: Linear + ReLU (bf16 MXU operands, f32 accum)
    for layer in range(1, N_LAYERS - 1):
        h = jnp.dot(h.astype(jnp.bfloat16), w_ref[layer],
                    preferred_element_type=jnp.float32)
        h = jnp.maximum(h + b_ref[layer:layer + 1, :], 0.0)

    # ---- output layer: Linear + Sigmoid  (sigmoid(z) = 0.5*tanh(z/2) + 0.5)
    z = jnp.dot(h.astype(jnp.bfloat16), w_ref[N_LAYERS - 1],
                preferred_element_type=jnp.float32)
    z = z + b_ref[N_LAYERS - 1:N_LAYERS, :]
    o_ref[...] = 0.5 * jnp.tanh(0.5 * z) + 0.5


def pack_params(params):
    """Stack (W, b) pairs into zero-padded bf16 (L,128,128) / f32 (L,128) arrays.

    W is stored (in_features, out_features), i.e. pre-transposed relative to
    nn.Linear.weight, so each layer is x @ W + b.  Call ONCE (hoisted out of
    the per-forward path).
    """
    w_stack = jnp.zeros((N_LAYERS, LANE, LANE), jnp.bfloat16)
    b_stack = jnp.zeros((N_LAYERS, LANE), jnp.float32)
    for i, (w, b) in enumerate(params):
        kin, kout = w.shape
        assert kin <= LANE and kout <= LANE
        w_stack = w_stack.at[i, :kin, :kout].set(w.astype(jnp.bfloat16))
        b_stack = b_stack.at[i, :kout].set(b.reshape(-1).astype(jnp.float32))
    return w_stack, b_stack


def _choose_row_tile(batch, max_row_tile):
    padded = _round_up(batch, 8)
    n_tiles = pl.cdiv(padded, max_row_tile)
    if padded >= 16:                 # >=2 grid steps -> both v7x TensorCores busy
        n_tiles = max(n_tiles, 2)
    tb = _round_up(pl.cdiv(padded, n_tiles), 8)
    padded_batch = _round_up(padded, tb)
    return tb, padded_batch


@functools.partial(jax.jit, static_argnames=("out_dim", "max_row_tile"))
def mlp_forward(x, w_stack, b_stack, *, out_dim, max_row_tile=512):
    """Full forward under one jit: pad -> pallas_call -> slice."""
    batch, in_dim = x.shape
    assert in_dim <= LANE
    in_pad = min(LANE, _round_up(in_dim, 32))
    tb, padded_batch = _choose_row_tile(batch, max_row_tile)

    # Pad the input once to a (padded_batch, in_pad) slab (fused under jit).
    x_pad = jnp.zeros((padded_batch, in_pad), jnp.float32)
    x_pad = x_pad.at[:batch, :in_dim].set(x.astype(jnp.float32))

    grid = (padded_batch // tb,)

    out_padded = pl.pallas_call(
        functools.partial(mlp_kernel, in_pad=in_pad),
        out_shape=jax.ShapeDtypeStruct((padded_batch, LANE), jnp.float32),
        grid=grid,
        in_specs=[
            pl.BlockSpec((tb, in_pad), lambda i: (i, 0)),                 # x rows
            pl.BlockSpec((N_LAYERS, LANE, LANE), lambda i: (0, 0, 0)),    # weights
            pl.BlockSpec((N_LAYERS, LANE), lambda i: (0, 0)),             # biases
        ],
        out_specs=pl.BlockSpec((tb, LANE), lambda i: (i, 0)),             # lane-dense out
        compiler_params=pltpu.CompilerParams(
            dimension_semantics=("parallel",)),
    )(x_pad, w_stack, b_stack)

    # Slice the lane-dense padded output back to the logical shape.
    return out_padded[:batch, :out_dim]


def init_linear(key, in_features, out_features):
    """Deterministic init mimicking PyTorch nn.Linear (uniform +/- 1/sqrt(in))."""
    kw, kb = jax.random.split(key)
    bound = 1.0 / jnp.sqrt(jnp.float32(in_features))
    w = jax.random.uniform(kw, (in_features, out_features), jnp.float32,
                           minval=-bound, maxval=bound)
    b = jax.random.uniform(kb, (out_features,), jnp.float32,
                           minval=-bound, maxval=bound)
    return w, b


if __name__ == "__main__":
    # Breast-cancer dataset -> input_dim=30; binary classification -> output_dim=1.
    input_dim = 30
    output_dim = 1
    batch = 8

    key = jax.random.PRNGKey(0)
    k_x, k1, k2, k3, k4 = jax.random.split(key, 5)

    x = jax.random.normal(k_x, (batch, input_dim), jnp.float32)

    params = [
        init_linear(k1, input_dim, 64),
        init_linear(k2, 64, 32),
        init_linear(k3, 32, 16),
        init_linear(k4, 16, output_dim),
    ]

    # Pack ONCE (hoisted out of the per-call path).
    w_stack, b_stack = pack_params(params)

    out = mlp_forward(x, w_stack, b_stack, out_dim=output_dim)
    out = jax.block_until_ready(out)
    assert out.shape == (batch, output_dim)

    # Reference 1: exact same math as the kernel (bf16 matmul operands, f32 accum).
    h = x
    for i, (w, b) in enumerate(params):
        h = jnp.dot(h.astype(jnp.bfloat16), w.astype(jnp.bfloat16),
                    preferred_element_type=jnp.float32) + b
        h = jnp.maximum(h, 0.0) if i < N_LAYERS - 1 else jax.nn.sigmoid(h)
    ref_bf16 = h
    assert jnp.allclose(out, ref_bf16, atol=2e-3, rtol=2e-3), (out, ref_bf16)

    # Reference 2: the original f32 module math (sanity check on bf16 weight cast).
    h = x
    for i, (w, b) in enumerate(params):
        h = h @ w + b
        h = jnp.maximum(h, 0.0) if i < N_LAYERS - 1 else jax.nn.sigmoid(h)
    ref_f32 = h
    assert jnp.allclose(out, ref_f32, atol=3e-2, rtol=3e-2), (out, ref_f32)

    print("KERNEL_OK")
</pallas_src>

<mosaic_0001>
module attributes {stable_mosaic.version = 11 : i64} {
  func.func @mlp_kernel(%arg0: i32, %arg1: memref<8x32xf32, #tpu.memory_space<vmem>>, %arg2: memref<4x128x128xbf16, #tpu.memory_space<vmem>>, %arg3: memref<4x128xf32, #tpu.memory_space<vmem>>, %arg4: memref<8x128xf32, #tpu.memory_space<vmem>>) attributes {dimension_semantics = [#tpu.dimension_semantics<parallel>], iteration_bounds = array<i64: 1>, scalar_prefetch = 0 : i64, scratch_operands = 0 : i64, tpu.core_type = #tpu.core_type<tc>, window_params = [{transform_indices = @transform_0, window_bounds = array<i64: 8, 32>}, {pipeline_mode = #tpu.pipeline_mode<synchronous>, transform_indices = @transform_1, window_bounds = array<i64: 4, 128, 128>}, {pipeline_mode = #tpu.pipeline_mode<synchronous>, transform_indices = @transform_2, window_bounds = array<i64: 4, 128>}, {transform_indices = @transform_3, window_bounds = array<i64: 8, 128>}]} {
    %c0 = arith.constant 0 : index
    %c0_0 = arith.constant 0 : index
    %0 = vector.load %arg1[%c0, %c0_0] : memref<8x32xf32, #tpu.memory_space<vmem>>, vector<8x32xf32>
    %1 = arith.truncf %0 : vector<8x32xf32> to vector<8x32xbf16>
    %c0_1 = arith.constant 0 : index
    %c0_2 = arith.constant 0 : index
    %c0_3 = arith.constant 0 : index
    %2 = vector.load %arg2[%c0_1, %c0_2, %c0_3] : memref<4x128x128xbf16, #tpu.memory_space<vmem>>, vector<1x32x128xbf16>
    %3 = vector.shape_cast %2 : vector<1x32x128xbf16> to vector<32x128xbf16>
    %cst = arith.constant dense<0.000000e+00> : vector<8x128xf32>
    %4 = tpu.matmul %1, %3, %cst {dimension_numbers = #tpu.dot_dimension_numbers<[1], [0], [0], [1], [0, 0, 1, 1], [], []>} : vector<8x32xbf16>, vector<32x128xbf16>, vector<8x128xf32> -> vector<8x128xf32>
    %c0_4 = arith.constant 0 : index
    %c0_5 = arith.constant 0 : index
    %5 = vector.load %arg3[%c0_4, %c0_5] : memref<4x128xf32, #tpu.memory_space<vmem>>, vector<1x128xf32>
    %6 = vector.broadcast %5 : vector<1x128xf32> to vector<8x128xf32>
    %7 = arith.addf %4, %6 : vector<8x128xf32>
    %cst_6 = arith.constant 0.000000e+00 : f32
    %8 = vector.broadcast %cst_6 : f32 to vector<8x128xf32>
    %9 = arith.maximumf %7, %8 : vector<8x128xf32>
    %10 = arith.truncf %9 : vector<8x128xf32> to vector<8x128xbf16>
    %c1 = arith.constant 1 : index
    %c0_7 = arith.constant 0 : index
    %c0_8 = arith.constant 0 : index
    %11 = vector.load %arg2[%c1, %c0_7, %c0_8] : memref<4x128x128xbf16, #tpu.memory_space<vmem>>, vector<1x128x128xbf16>
    %12 = vector.shape_cast %11 : vector<1x128x128xbf16> to vector<128x128xbf16>
    %cst_9 = arith.constant dense<0.000000e+00> : vector<8x128xf32>
    %13 = tpu.matmul %10, %12, %cst_9 {dimension_numbers = #tpu.dot_dimension_numbers<[1], [0], [0], [1], [0, 0, 1, 1], [], []>} : vector<8x128xbf16>, vector<128x128xbf16>, vector<8x128xf32> -> vector<8x128xf32>
    %c1_10 = arith.constant 1 : index
    %c0_11 = arith.constant 0 : index
    %14 = vector.load %arg3[%c1_10, %c0_11] : memref<4x128xf32, #tpu.memory_space<vmem>>, vector<1x128xf32>
    %15 = vector.broadcast %14 : vector<1x128xf32> to vector<8x128xf32>
    %16 = arith.addf %13, %15 : vector<8x128xf32>
    %cst_12 = arith.constant 0.000000e+00 : f32
    %17 = vector.broadcast %cst_12 : f32 to vector<8x128xf32>
    %18 = arith.maximumf %16, %17 : vector<8x128xf32>
    %19 = arith.truncf %18 : vector<8x128xf32> to vector<8x128xbf16>
    %c2 = arith.constant 2 : index
    %c0_13 = arith.constant 0 : index
    %c0_14 = arith.constant 0 : index
    %20 = vector.load %arg2[%c2, %c0_13, %c0_14] : memref<4x128x128xbf16, #tpu.memory_space<vmem>>, vector<1x128x128xbf16>
    %21 = vector.shape_cast %20 : vector<1x128x128xbf16> to vector<128x128xbf16>
    %cst_15 = arith.constant dense<0.000000e+00> : vector<8x128xf32>
    %22 = tpu.matmul %19, %21, %cst_15 {dimension_numbers = #tpu.dot_dimension_numbers<[1], [0], [0], [1], [0, 0, 1, 1], [], []>} : vector<8x128xbf16>, vector<128x128xbf16>, vector<8x128xf32> -> vector<8x128xf32>
    %c2_16 = arith.constant 2 : index
    %c0_17 = arith.constant 0 : index
    %23 = vector.load %arg3[%c2_16, %c0_17] : memref<4x128xf32, #tpu.memory_space<vmem>>, vector<1x128xf32>
    %24 = vector.broadcast %23 : vector<1x128xf32> to vector<8x128xf32>
    %25 = arith.addf %22, %24 : vector<8x128xf32>
    %cst_18 = arith.constant 0.000000e+00 : f32
    %26 = vector.broadcast %cst_18 : f32 to vector<8x128xf32>
    %27 = arith.maximumf %25, %26 : vector<8x128xf32>
    %28 = arith.truncf %27 : vector<8x128xf32> to vector<8x128xbf16>
    %c3 = arith.constant 3 : index
    %c0_19 = arith.constant 0 : index
    %c0_20 = arith.constant 0 : index
    %29 = vector.load %arg2[%c3, %c0_19, %c0_20] : memref<4x128x128xbf16, #tpu.memory_space<vmem>>, vector<1x128x128xbf16>
    %30 = vector.shape_cast %29 : vector<1x128x128xbf16> to vector<128x128xbf16>
    %cst_21 = arith.constant dense<0.000000e+00> : vector<8x128xf32>
    %31 = tpu.matmul %28, %30, %cst_21 {dimension_numbers = #tpu.dot_dimension_numbers<[1], [0], [0], [1], [0, 0, 1, 1], [], []>} : vector<8x128xbf16>, vector<128x128xbf16>, vector<8x128xf32> -> vector<8x128xf32>
    %c3_22 = arith.constant 3 : index
    %c0_23 = arith.constant 0 : index
    %32 = vector.load %arg3[%c3_22, %c0_23] : memref<4x128xf32, #tpu.memory_space<vmem>>, vector<1x128xf32>
    %33 = vector.broadcast %32 : vector<1x128xf32> to vector<8x128xf32>
    %34 = arith.addf %31, %33 : vector<8x128xf32>
    %cst_24 = arith.constant 5.000000e-01 : f32
    %35 = vector.broadcast %cst_24 : f32 to vector<8x128xf32>
    %36 = arith.mulf %35, %34 : vector<8x128xf32>
    %37 = math.tanh %36 : vector<8x128xf32>
    %cst_25 = arith.constant 5.000000e-01 : f32
    %38 = vector.broadcast %cst_25 : f32 to vector<8x128xf32>
    %39 = arith.mulf %38, %37 : vector<8x128xf32>
    %cst_26 = arith.constant 5.000000e-01 : f32
    %40 = vector.broadcast %cst_26 : f32 to vector<8x128xf32>
    %41 = arith.addf %39, %40 : vector<8x128xf32>
    %c0_27 = arith.constant 0 : index
    %c0_28 = arith.constant 0 : index
    %42 = vector.load %arg4[%c0_27, %c0_28] : memref<8x128xf32, #tpu.memory_space<vmem>>, vector<8x128xf32>
    tpu.vector_store %arg4[%c0_27, %c0_28], %41 {strides = array<i32>} : memref<8x128xf32, #tpu.memory_space<vmem>>, vector<8x128xf32>,
    return
  }
  func.func @transform_0(%arg0: i32) -> (i32, i32) {
    %c0_i32 = arith.constant 0 : i32
    %c0_i32_0 = arith.constant 0 : i32
    return %arg0, %c0_i32 : i32, i32
  }
  func.func @transform_1(%arg0: i32) -> (i32, i32, i32) {
    %c0_i32 = arith.constant 0 : i32
    %c0_i32_0 = arith.constant 0 : i32
    %c0_i32_1 = arith.constant 0 : i32
    %c0_i32_2 = arith.constant 0 : i32
    return %c0_i32, %c0_i32_0, %c0_i32_1 : i32, i32, i32
  }
  func.func @transform_2(%arg0: i32) -> (i32, i32) {
    %c0_i32 = arith.constant 0 : i32
    %c0_i32_0 = arith.constant 0 : i32
    %c0_i32_1 = arith.constant 0 : i32
    return %c0_i32, %c0_i32_0 : i32, i32
  }
  func.func @transform_3(%arg0: i32) -> (i32, i32) {
    %c0_i32 = arith.constant 0 : i32
    %c0_i32_0 = arith.constant 0 : i32
    return %arg0, %c0_i32 : i32, i32
  }
}

</mosaic_0001>

<llo_original>
// kernel: mlp_forward.1
$region0: #{mlp_forward.1}
  #allocation0 [shape = 'u32[]', space=smem, size = 0x4, offset = 0x4, fixed_abs, tag = 'smem constant byte address 0x4 - core index']
  #allocation1 [shape = 'u32[144,128]{1,0:T(1,128)}', space=vmem, size = 0x12000, scoped, tag = 'internal scratch']
  %s0 = inlined_call_operand.vmem [shape: f32[8,32], index: 0, kind: input, shape index: {}]
  %s1 = inlined_call_operand.hbm [shape: bf16[4,128,128], index: 1, kind: input, shape index: {}]
  %s2 = inlined_call_operand.vmem [shape: f32[4,128], index: 2, kind: input, shape index: {}]
  %s3 = inlined_call_operand.vmem [shape: f32[8,128], index: 3, kind: output, shape index: {}]
  %s4 = sld [smem:[#allocation0]]
  $region26: #{mlp_forward.1} parent=0
    _
  %s6 = ssub.s32 1, %s4
  %s7 = scalar_select 0, %s6, %s4
  $region1: #{mlp_forward.1} parent=0
    #allocation2 [shape = 'u8[131072]{0}', space=vmem, size = 0x20000, scoped, tag = 'input window, operand 1, single buffered']
    #allocation3 [shape = 's32[1]{0}', space=sflag, size = 0x4, scoped, tag = 'scoped memory for mlp_forward.1']
    %8 = vsyncpa [#allocation3], 0
    // Predicated region
    $region2: #{mlp_forward.1} parent=1 // pred_check
      _
    $region3: #{mlp_forward.1} parent=1 // pred_check_branch
      %10 = sbr.rel (0) target = $region5
    $region4: #{mlp_forward.1} parent=1 // pred_region
      _
    $region5: #{mlp_forward.1} parent=1 // pred_fallthru
      _
    // Predicated region
    $region6: #{mlp_forward.1} parent=1 // pred_check
      _
    $region7: #{mlp_forward.1} parent=1 // pred_check_branch
      %12 = sbr.rel (0) target = $region9
    $region8: #{mlp_forward.1} parent=1 // pred_region
      %s14 = ssub.s32 4096, 4096
      %15 = vsyncadd [#allocation3], %s14
      %s16 = sshll.u32 [#allocation2], 4
      %s17 = int_to_ptr.vmem [resolvable:$true] %s16
      %22 = dma.hbm_to_vmem [thread:$0]  %s1, 4096, %s17, [#allocation3], 64, 64, 4
    $region9: #{mlp_forward.1} parent=1 // pred_fallthru
      _
    // Predicated region
    $region10: #{mlp_forward.1} parent=1 // pred_check
      _
    $region11: #{mlp_forward.1} parent=1 // pred_check_branch
      %24 = sbr.rel (0) target = $region13
    $region12: #{mlp_forward.1} parent=1 // pred_region
      _
    $region13: #{mlp_forward.1} parent=1 // pred_fallthru
      _
    // Predicated region
    $region14: #{mlp_forward.1} parent=1 // pred_check
      _
    $region15: #{mlp_forward.1} parent=1 // pred_check_branch
      %26 = sbr.rel (0) target = $region17
    $region16: #{mlp_forward.1} parent=1 // pred_region
      %27 = dma.done [#allocation3], 4096
    $region17: #{mlp_forward.1} parent=1 // pred_fallthru
      _
    %v29 = vld [vmem:[%s0] sm:$0xff]
    %v30 = vpack.c.bf16 %v29, %v29
    %v31 = vld [vmem:[#allocation2] sm:$0xf]
    %v32 = vld [vmem:[#allocation2 + $0x4] sm:$0xf]
    %v33 = vld [vmem:[#allocation2 + $0x8] sm:$0xf]
    %v34 = vld [vmem:[#allocation2 + $0xc] sm:$0xf]
    %v35 = vld [vmem:[%s2] sm:$0x1]
    %v36 = vlaneseq
    %v37 = vshrl.u32 %v36, 7
    %v38 = vsub.s32 0, %v37
    %v39 = vrot.slane %v35, %v38
    %v44 = vunpack.c.l.b16 %v31
    %v45 = vunpack.c.l.b16 %v32
    %v46 = vunpack.c.l.b16 %v33
    %v47 = vunpack.c.l.b16 %v34
    %v48 = vpack.c.b16 %v45, %v44
    %v49 = vpack.c.b16 %v47, %v46
    %vm52 = vcmask 261120
    %v54 = vsel %vm52, %v30, 0
    %56 = vmatprep.subr.bf16.mxu0 0
    %57 = vmatpush1.bf16.msra.mxu0 0
    %58 = vmatprep.subr.bf16.mxu0 0
    %59 = vmatpush1.bf16.msra.mxu0 0
    %60 = vmatprep.subr.bf16.mxu0 0
    %61 = vmatpush1.bf16.msra.mxu0 0
    %62 = vmatprep.subr.bf16.mxu0 0
    %63 = vmatpush1.bf16.msra.mxu0 0
    %64 = vmatprep.subr.bf16.mxu0 0
    %65 = vmatpush1.bf16.msra.mxu0 0
    %66 = vmatprep.subr.bf16.mxu0 0
    %67 = vmatpush1.bf16.msra.mxu0 0
    %68 = vmatprep.subr.bf16.mxu0 0
    %69 = vmatpush1.bf16.msra.mxu0 %v49
    %70 = vmatprep.subr.bf16.mxu0 0
    %71 = vmatpush1.bf16.msra.mxu0 %v48
    %72 = vmatprep.subr.bf16.mxu0 0
    %73 = vmatpush2.bf16.msra.mxu0 0
    %74 = vmatprep.subr.bf16.mxu0 0
    %75 = vmatpush2.bf16.msra.mxu0 0
    %76 = vmatprep.subr.bf16.mxu0 0
    %77 = vmatpush2.bf16.msra.mxu0 0
    %78 = vmatprep.subr.bf16.mxu0 0
    %79 = vmatpush2.bf16.msra.mxu0 0
    %80 = vmatprep.subr.bf16.mxu0 0
    %81 = vmatpush2.bf16.msra.mxu0 0
    %82 = vmatprep.subr.bf16.mxu0 0
    %83 = vmatpush2.bf16.msra.mxu0 0
    %84 = vmatprep.subr.bf16.mxu0 0
    %85 = vmatpush2.bf16.msra.mxu0 0
    %86 = vmatprep.subr.bf16.mxu0 0
    %87 = vmatpush2.bf16.msra.mxu0 0
    %88 = vmatprep.mubr.bf16.mxu0 0
    %89 = vmatmul.mubr.bf16.gmra.mxu0 %v54
    %v90 = vpop.f32.mrf.mxu0
    %v91 = vadd.f32 %v39, %v90
    %v92 = vpop.f32.mrf.mxu0
    %v93 = vpop.f32.mrf.mxu0
    %v94 = vpop.f32.mrf.mxu0
    %95 = vdwg.mxu0
    %v96 = vmax.f32 %v91, 0.0
    %v97 = vpack.c.bf16 %v96, %v96
    %s98 = scalar_lea.vmem [#allocation2], 64
    %v99 = vld [vmem:[%s98] sm:$0xf]
    %v100 = vld [vmem:[%s98 + $0x4] sm:$0xf]
    %v101 = vld [vmem:[%s98 + $0x8] sm:$0xf]
    %v102 = vld [vmem:[%s98 + $0xc] sm:$0xf]
    %v103 = vld [vmem:[%s98 + $0x10] sm:$0xf]
    %v104 = vld [vmem:[%s98 + $0x14] sm:$0xf]
    %v105 = vld [vmem:[%s98 + $0x18] sm:$0xf]
    %v106 = vld [vmem:[%s98 + $0x1c] sm:$0xf]
    %v107 = vld [vmem:[%s98 + $0x20] sm:$0xf]
    %v108 = vld [vmem:[%s98 + $0x24] sm:$0xf]
    %v109 = vld [vmem:[%s98 + $0x28] sm:$0xf]
    %v110 = vld [vmem:[%s98 + $0x2c] sm:$0xf]
    %v111 = vld [vmem:[%s98 + $0x30] sm:$0xf]
    %v112 = vld [vmem:[%s98 + $0x34] sm:$0xf]
    %v113 = vld [vmem:[%s98 + $0x38] sm:$0xf]
    %v114 = vld [vmem:[%s98 + $0x3c] sm:$0xf]
    %v115 = vld [vmem:[%s2 + $0x1] sm:$0x1]
    %v116 = vlaneseq
    %v117 = vshrl.u32 %v116, 7
    %v118 = vsub.s32 0, %v117
    %v119 = vrot.slane %v115, %v118
    %v136 = vunpack.c.l.b16 %v99
    %v137 = vunpack.c.l.b16 %v100
    %v138 = vunpack.c.l.b16 %v101
    %v139 = vunpack.c.l.b16 %v102
    %v140 = vunpack.c.l.b16 %v103
    %v141 = vunpack.c.l.b16 %v104
    %v142 = vunpack.c.l.b16 %v105
    %v143 = vunpack.c.l.b16 %v106
    %v144 = vunpack.c.l.b16 %v107
    %v145 = vunpack.c.l.b16 %v108
    %v146 = vunpack.c.l.b16 %v109
    %v147 = vunpack.c.l.b16 %v110
    %v148 = vunpack.c.l.b16 %v111
    %v149 = vunpack.c.l.b16 %v112
    %v150 = vunpack.c.l.b16 %v113
    %v151 = vunpack.c.l.b16 %v114
    %v152 = vpack.c.b16 %v137, %v136
    %v153 = vpack.c.b16 %v139, %v138
    %v154 = vpack.c.b16 %v141, %v140
    %v155 = vpack.c.b16 %v143, %v142
    %v156 = vpack.c.b16 %v145, %v144
    %v157 = vpack.c.b16 %v147, %v146
    %v158 = vpack.c.b16 %v149, %v148
    %v159 = vpack.c.b16 %v151, %v150
    %168 = vmatprep.subr.bf16.mxu0 0
    %169 = vmatpush1.bf16.msra.mxu0 %v159
    %170 = vmatprep.subr.bf16.mxu0 0
    %171 = vmatpush1.bf16.msra.mxu0 %v158
    %172 = vmatprep.subr.bf16.mxu0 0
    %173 = vmatpush1.bf16.msra.mxu0 %v157
    %174 = vmatprep.subr.bf16.mxu0 0
    %175 = vmatpush1.bf16.msra.mxu0 %v156
    %176 = vmatprep.subr.bf16.mxu0 0
    %177 = vmatpush1.bf16.msra.mxu0 %v155
    %178 = vmatprep.subr.bf16.mxu0 0
    %179 = vmatpush1.bf16.msra.mxu0 %v154
    %180 = vmatprep.subr.bf16.mxu0 0
    %181 = vmatpush1.bf16.msra.mxu0 %v153
    %182 = vmatprep.subr.bf16.mxu0 0
    %183 = vmatpush1.bf16.msra.mxu0 %v152
    %184 = vmatprep.subr.bf16.mxu0 0
    %185 = vmatpush2.bf16.msra.mxu0 0
    %186 = vmatprep.subr.bf16.mxu0 0
    %187 = vmatpush2.bf16.msra.mxu0 0
    %188 = vmatprep.subr.bf16.mxu0 0
    %189 = vmatpush2.bf16.msra.mxu0 0
    %190 = vmatprep.subr.bf16.mxu0 0
    %191 = vmatpush2.bf16.msra.mxu0 0
    %192 = vmatprep.subr.bf16.mxu0 0
    %193 = vmatpush2.bf16.msra.mxu0 0
    %194 = vmatprep.subr.bf16.mxu0 0
    %195 = vmatpush2.bf16.msra.mxu0 0
    %196 = vmatprep.subr.bf16.mxu0 0
    %197 = vmatpush2.bf16.msra.mxu0 0
    %198 = vmatprep.subr.bf16.mxu0 0
    %199 = vmatpush2.bf16.msra.mxu0 0
    %200 = vmatprep.mubr.bf16.mxu0 0
    %201 = vmatmul.mubr.bf16.gmra.mxu0 %v97
    %v202 = vpop.f32.mrf.mxu0
    %v203 = vadd.f32 %v119, %v202
    %v204 = vpop.f32.mrf.mxu0
    %v205 = vpop.f32.mrf.mxu0
    %v206 = vpop.f32.mrf.mxu0
    %207 = vdwg.mxu0
    %v208 = vmax.f32 %v203, 0.0
    %v209 = vpack.c.bf16 %v208, %v208
    %s210 = scalar_lea.vmem [#allocation2], 128
    %v211 = vld [vmem:[%s210] sm:$0xf]
    %v212 = vld [vmem:[%s210 + $0x4] sm:$0xf]
    %v213 = vld [vmem:[%s210 + $0x8] sm:$0xf]
    %v214 = vld [vmem:[%s210 + $0xc] sm:$0xf]
    %v215 = vld [vmem:[%s210 + $0x10] sm:$0xf]
    %v216 = vld [vmem:[%s210 + $0x14] sm:$0xf]
    %v217 = vld [vmem:[%s210 + $0x18] sm:$0xf]
    %v218 = vld [vmem:[%s210 + $0x1c] sm:$0xf]
    %v219 = vld [vmem:[%s210 + $0x20] sm:$0xf]
    %v220 = vld [vmem:[%s210 + $0x24] sm:$0xf]
    %v221 = vld [vmem:[%s210 + $0x28] sm:$0xf]
    %v222 = vld [vmem:[%s210 + $0x2c] sm:$0xf]
    %v223 = vld [vmem:[%s210 + $0x30] sm:$0xf]
    %v224 = vld [vmem:[%s210 + $0x34] sm:$0xf]
    %v225 = vld [vmem:[%s210 + $0x38] sm:$0xf]
    %v226 = vld [vmem:[%s210 + $0x3c] sm:$0xf]
    %v227 = vld [vmem:[%s2 + $0x2] sm:$0x1]
    %v228 = vlaneseq
    %v229 = vshrl.u32 %v228, 7
    %v230 = vsub.s32 0, %v229
    %v231 = vrot.slane %v227, %v230
    %v248 = vunpack.c.l.b16 %v211
    %v249 = vunpack.c.l.b16 %v212
    %v250 = vunpack.c.l.b16 %v213
    %v251 = vunpack.c.l.b16 %v214
    %v252 = vunpack.c.l.b16 %v215
    %v253 = vunpack.c.l.b16 %v216
    %v254 = vunpack.c.l.b16 %v217
    %v255 = vunpack.c.l.b16 %v218
    %v256 = vunpack.c.l.b16 %v219
    %v257 = vunpack.c.l.b16 %v220
    %v258 = vunpack.c.l.b16 %v221
    %v259 = vunpack.c.l.b16 %v222
    %v260 = vunpack.c.l.b16 %v223
    %v261 = vunpack.c.l.b16 %v224
    %v262 = vunpack.c.l.b16 %v225
    %v263 = vunpack.c.l.b16 %v226
    %v264 = vpack.c.b16 %v249, %v248
    %v265 = vpack.c.b16 %v251, %v250
    %v266 = vpack.c.b16 %v253, %v252
    %v267 = vpack.c.b16 %v255, %v254
    %v268 = vpack.c.b16 %v257, %v256
    %v269 = vpack.c.b16 %v259, %v258
    %v270 = vpack.c.b16 %v261, %v260
    %v271 = vpack.c.b16 %v263, %v262
    %280 = vmatprep.subr.bf16.mxu0 0
    %281 = vmatpush1.bf16.msra.mxu0 %v271
    %282 = vmatprep.subr.bf16.mxu0 0
    %283 = vmatpush1.bf16.msra.mxu0 %v270
    %284 = vmatprep.subr.bf16.mxu0 0
    %285 = vmatpush1.bf16.msra.mxu0 %v269
    %286 = vmatprep.subr.bf16.mxu0 0
    %287 = vmatpush1.bf16.msra.mxu0 %v268
    %288 = vmatprep.subr.bf16.mxu0 0
    %289 = vmatpush1.bf16.msra.mxu0 %v267
    %290 = vmatprep.subr.bf16.mxu0 0
    %291 = vmatpush1.bf16.msra.mxu0 %v266
    %292 = vmatprep.subr.bf16.mxu0 0
    %293 = vmatpush1.bf16.msra.mxu0 %v265
    %294 = vmatprep.subr.bf16.mxu0 0
    %295 = vmatpush1.bf16.msra.mxu0 %v264
    %296 = vmatprep.subr.bf16.mxu0 0
    %297 = vmatpush2.bf16.msra.mxu0 0
    %298 = vmatprep.subr.bf16.mxu0 0
    %299 = vmatpush2.bf16.msra.mxu0 0
    %300 = vmatprep.subr.bf16.mxu0 0
    %301 = vmatpush2.bf16.msra.mxu0 0
    %302 = vmatprep.subr.bf16.mxu0 0
    %303 = vmatpush2.bf16.msra.mxu0 0
    %304 = vmatprep.subr.bf16.mxu0 0
    %305 = vmatpush2.bf16.msra.mxu0 0
    %306 = vmatprep.subr.bf16.mxu0 0
    %307 = vmatpush2.bf16.msra.mxu0 0
    %308 = vmatprep.subr.bf16.mxu0 0
    %309 = vmatpush2.bf16.msra.mxu0 0
    %310 = vmatprep.subr.bf16.mxu0 0
    %311 = vmatpush2.bf16.msra.mxu0 0
    %312 = vmatprep.mubr.bf16.mxu0 0
    %313 = vmatmul.mubr.bf16.gmra.mxu0 %v209
    %v314 = vpop.f32.mrf.mxu0
    %v315 = vadd.f32 %v231, %v314
    %v316 = vpop.f32.mrf.mxu0
    %v317 = vpop.f32.mrf.mxu0
    %v318 = vpop.f32.mrf.mxu0
    %319 = vdwg.mxu0
    %v320 = vmax.f32 %v315, 0.0
    %v321 = vpack.c.bf16 %v320, %v320
    %s322 = scalar_lea.vmem [#allocation2], 192
    %v323 = vld [vmem:[%s322] sm:$0xf]
    %v324 = vld [vmem:[%s322 + $0x4] sm:$0xf]
    %v325 = vld [vmem:[%s322 + $0x8] sm:$0xf]
    %v326 = vld [vmem:[%s322 + $0xc] sm:$0xf]
    %v327 = vld [vmem:[%s322 + $0x10] sm:$0xf]
    %v328 = vld [vmem:[%s322 + $0x14] sm:$0xf]
    %v329 = vld [vmem:[%s322 + $0x18] sm:$0xf]
    %v330 = vld [vmem:[%s322 + $0x1c] sm:$0xf]
    %v331 = vld [vmem:[%s322 + $0x20] sm:$0xf]
    %v332 = vld [vmem:[%s322 + $0x24] sm:$0xf]
    %v333 = vld [vmem:[%s322 + $0x28] sm:$0xf]
    %v334 = vld [vmem:[%s322 + $0x2c] sm:$0xf]
    %v335 = vld [vmem:[%s322 + $0x30] sm:$0xf]
    %v336 = vld [vmem:[%s322 + $0x34] sm:$0xf]
    %v337 = vld [vmem:[%s322 + $0x38] sm:$0xf]
    %v338 = vld [vmem:[%s322 + $0x3c] sm:$0xf]
    %v339 = vld [vmem:[%s2 + $0x3] sm:$0x1]
    %v340 = vlaneseq
    %v341 = vshrl.u32 %v340, 7
    %v342 = vsub.s32 0, %v341
    %v343 = vrot.slane %v339, %v342
    %v360 = vunpack.c.l.b16 %v323
    %v361 = vunpack.c.l.b16 %v324
    %v362 = vunpack.c.l.b16 %v325
    %v363 = vunpack.c.l.b16 %v326
    %v364 = vunpack.c.l.b16 %v327
    %v365 = vunpack.c.l.b16 %v328
    %v366 = vunpack.c.l.b16 %v329
    %v367 = vunpack.c.l.b16 %v330
    %v368 = vunpack.c.l.b16 %v331
    %v369 = vunpack.c.l.b16 %v332
    %v370 = vunpack.c.l.b16 %v333
    %v371 = vunpack.c.l.b16 %v334
    %v372 = vunpack.c.l.b16 %v335
    %v373 = vunpack.c.l.b16 %v336
    %v374 = vunpack.c.l.b16 %v337
    %v375 = vunpack.c.l.b16 %v338
    %v376 = vpack.c.b16 %v361, %v360
    %v377 = vpack.c.b16 %v363, %v362
    %v378 = vpack.c.b16 %v365, %v364
    %v379 = vpack.c.b16 %v367, %v366
    %v380 = vpack.c.b16 %v369, %v368
    %v381 = vpack.c.b16 %v371, %v370
    %v382 = vpack.c.b16 %v373, %v372
    %v383 = vpack.c.b16 %v375, %v374
    %392 = vmatprep.subr.bf16.mxu0 0
    %393 = vmatpush1.bf16.msra.mxu0 %v383
    %394 = vmatprep.subr.bf16.mxu0 0
    %395 = vmatpush1.bf16.msra.mxu0 %v382
    %396 = vmatprep.subr.bf16.mxu0 0
    %397 = vmatpush1.bf16.msra.mxu0 %v381
    %398 = vmatprep.subr.bf16.mxu0 0
    %399 = vmatpush1.bf16.msra.mxu0 %v380
    %400 = vmatprep.subr.bf16.mxu0 0
    %401 = vmatpush1.bf16.msra.mxu0 %v379
    %402 = vmatprep.subr.bf16.mxu0 0
    %403 = vmatpush1.bf16.msra.mxu0 %v378
    %404 = vmatprep.subr.bf16.mxu0 0
    %405 = vmatpush1.bf16.msra.mxu0 %v377
    %406 = vmatprep.subr.bf16.mxu0 0
    %407 = vmatpush1.bf16.msra.mxu0 %v376
    %408 = vmatprep.subr.bf16.mxu0 0
    %409 = vmatpush2.bf16.msra.mxu0 0
    %410 = vmatprep.subr.bf16.mxu0 0
    %411 = vmatpush2.bf16.msra.mxu0 0
    %412 = vmatprep.subr.bf16.mxu0 0
    %413 = vmatpush2.bf16.msra.mxu0 0
    %414 = vmatprep.subr.bf16.mxu0 0
    %415 = vmatpush2.bf16.msra.mxu0 0
    %416 = vmatprep.subr.bf16.mxu0 0
    %417 = vmatpush2.bf16.msra.mxu0 0
    %418 = vmatprep.subr.bf16.mxu0 0
    %419 = vmatpush2.bf16.msra.mxu0 0
    %420 = vmatprep.subr.bf16.mxu0 0
    %421 = vmatpush2.bf16.msra.mxu0 0
    %422 = vmatprep.subr.bf16.mxu0 0
    %423 = vmatpush2.bf16.msra.mxu0 0
    %424 = vmatprep.mubr.bf16.mxu0 0
    %425 = vmatmul.mubr.bf16.gmra.mxu0 %v321
    %v426 = vpop.f32.mrf.mxu0
    %v427 = vadd.f32 %v343, %v426
    %v428 = vpop.f32.mrf.mxu0
    %v429 = vpop.f32.mrf.mxu0
    %v430 = vpop.f32.mrf.mxu0
    %431 = vdwg.mxu0
    %v432 = vmul.f32 %v427, 0.5
    %v433 = vtanh.pop %v432
    %v434 = vmul.f32 %v433, 0.5
    %v435 = vadd.f32 %v434, 0.5
    %436 = vst [vmem:[%s3] sm:$0xff] %v435
    // Predicated region
    $region18: #{mlp_forward.1} parent=1 // pred_check
      _
    $region19: #{mlp_forward.1} parent=1 // pred_check_branch
      %438 = sbr.rel (0) target = $region21
    $region20: #{mlp_forward.1} parent=1 // pred_region
      _
    $region21: #{mlp_forward.1} parent=1 // pred_fallthru
      _
    // Predicated region
    $region22: #{mlp_forward.1} parent=1 // pred_check
      _
    $region23: #{mlp_forward.1} parent=1 // pred_check_branch
      %440 = sbr.rel (0) target = $region25
    $region24: #{mlp_forward.1} parent=1 // pred_region
      _
    $region25: #{mlp_forward.1} parent=1 // pred_fallthru
      _
    %441 = vsyncpa [#allocation3], 1

</llo_original>
